<compile_context>
chip_gen: v6e
topology: v6e:2x2x1
jax: 0.10.0
libtpu: 0.0.40
codegen_flags: <defaults>
</compile_context>

<pallas_src>
import functools
import math

import jax
import jax.numpy as jnp
from jax.experimental import pallas as pl
from jax.experimental.pallas import tpu as pltpu


def _ffn_kernel(x_ref, w1_ref, b1_ref, red_ref, sc_ref, out_ref, *,
                approximate_gelu):
    """fc1 + GELU + fused(LayerNorm-affine, fc2) for one (TM, H) row tile.

    x_ref   : (TM, H) bf16   activation tile
    w1_ref  : (H, H)  bf16   fc1 weight, stored (H_in, H_out), resident
    b1_ref  : (1, H)  f32    fc1 bias, resident
    red_ref : (8, H)  bf16   reduction matrix: row0 = gamma*w2, row1 = 1/H
    sc_ref  : (2,)    f32    SMEM: [sum(gamma*w2), sum(beta*w2) + b2]
    out_ref : (1, TM) f32    pre-softmax logits, lane-dense
    """
    x = x_ref[...]

    # fc1 on the MXU: bf16 operands, f32 accumulation.
    h = jnp.dot(x, w1_ref[...], preferred_element_type=jnp.float32)
    h = h + b1_ref[...]

    if approximate_gelu:
        # tanh-approx GELU: the transcendental lands on the (otherwise idle)
        # EUP slot instead of a long VPU erf polynomial.
        a = 0.5 * h * (1.0 + jnp.tanh(0.7978845608028654
                                      * (h + 0.044715 * (h * h * h))))
    else:
        # exact erf GELU, matching the PyTorch reference formula.
        a = 0.5 * h * (1.0 + jax.lax.erf(h * (1.0 / math.sqrt(2.0))))

    # MXU reductions over the hidden axis (contract dim 1 of both operands,
    # i.e. the flash-attention q@k^T pattern). Results come out with the TM
    # rows on the 128-lane axis -> no transpose needed for the lane-dense
    # store, and the fc2 dot / LN mean / mean-of-squares all leave the VPU/XLU.
    a_bf = a.astype(jnp.bfloat16)
    aa_bf = (a * a).astype(jnp.bfloat16)
    dn = (((1,), (1,)), ((), ()))
    r1 = jax.lax.dot_general(red_ref[...], a_bf, dn,
                             preferred_element_type=jnp.float32)   # (8, TM)
    r2 = jax.lax.dot_general(red_ref[...], aa_bf, dn,
                             preferred_element_type=jnp.float32)   # (8, TM)
    dot_aw = r1[0:1, :]   # sum_h a * (gamma*w2)      (1, TM)
    mu = r1[1:2, :]       # mean(a)                   (1, TM)
    m2 = r2[1:2, :]       # mean(a*a)                 (1, TM)

    # One-pass LayerNorm statistics (clamped against cancellation).
    var = jnp.maximum(m2 - mu * mu, 0.0)
    rstd = jax.lax.rsqrt(var + 1e-5)

    # Fused LN-affine + fc2: ln is never materialized.
    #   logit = rstd*(sum(a*(g*w2)) - mu*sum(g*w2)) + (sum(b*w2) + b2)
    s = sc_ref[0]
    c = sc_ref[1]
    out_ref[...] = rstd * (dot_aw - mu * s) + c


def _round_up(x, m):
    return ((x + m - 1) // m) * m


def _pick_tile_rows(B, max_block_rows=512):
    """128/256-aligned row tile; >= 2 grid steps when B is large (v7x 2 TCs)."""
    if B <= 128:
        # Tiny problem: one 16-row-aligned tile (bf16 sublane packing); the
        # output block then covers the whole padded row -> always legal.
        return _round_up(max(B, 8), 16)
    if B < 512:
        return 128                         # >= 2 grid steps, 128-aligned
    tm = min(max_block_rows, max(256, ((B // 2) // 256) * 256))
    return max(128, (tm // 128) * 128)     # keep lane-dense out blocks legal


def retrieve_model_forward(input_ids, input_mask, params, *,
                           max_block_rows=512, approximate_gelu=True):
    """JAX/Pallas equivalent of RetrieveModel.forward (inference)."""
    bs, num_rows, seq_len = input_ids.shape
    flat_ids = input_ids.reshape(bs * num_rows, seq_len)
    _ = input_mask  # attention mask is consumed by the (external) BERT encoder

    # TODO(synk): the external HuggingFace BERT encoder has no in-script Pallas
    # equivalent; use a deterministic embedding-lookup surrogate for the CLS
    # hidden state (bert_model(...)[0][:, 0, :]).
    emb = params["word_emb"]
    if emb.dtype != jnp.bfloat16:
        emb = emb.astype(jnp.bfloat16)
    cls_bf16 = emb[flat_ids[:, 0]]                                   # (B, H) bf16
    B, H = cls_bf16.shape

    # Fold LayerNorm affine + fc2 + biases into the fused form.
    gamma = params["gamma"].reshape(1, H).astype(jnp.float32)
    beta = params["beta"].reshape(1, H).astype(jnp.float32)
    w2 = params["w2"].reshape(1, H).astype(jnp.float32)
    w2p = gamma * w2                                                 # (1, H)
    s = jnp.sum(w2p)
    c = jnp.sum(beta * w2) + params["b2"].reshape(())
    scalars = jnp.stack([s, c]).astype(jnp.float32)                  # (2,) SMEM

    # (8, H) bf16 reduction matrix for the MXU-side fc2 dot / row means.
    red = jnp.zeros((8, H), jnp.float32)
    red = red.at[0, :].set(w2p[0])
    red = red.at[1, :].set(1.0 / H)
    red = red.astype(jnp.bfloat16)

    w1_bf16 = params["w1"].astype(jnp.bfloat16)
    b1 = params["b1"].reshape(1, H).astype(jnp.float32)

    # Tile selection + row padding (padded rows are zero; their garbage logits
    # are discarded before the softmax).
    tm = _pick_tile_rows(B, max_block_rows)
    B_pad = _round_up(B, tm)
    x = cls_bf16 if B_pad == B else jnp.pad(cls_bf16, ((0, B_pad - B), (0, 0)))
    grid = (B_pad // tm,)

    # Per-generation VMEM cap: derive from the actual chip (64 MiB/TC on v7x,
    # 128 MiB on v5e/v6e) instead of a fixed, double-hedged budget.
    try:
        vmem_cap = int(pltpu.get_tpu_info().vmem_capacity_bytes)
    except Exception:  # pragma: no cover - conservative fallback
        vmem_cap = 64 * 1024 * 1024
    vmem_need = (2 * tm * H * 2          # double-buffered bf16 activation tiles
                 + 2 * tm * 4            # double-buffered (1, tm) f32 logit tiles
                 + H * H * 2             # resident bf16 fc1 weight
                 + H * 4 + 8 * H * 2     # resident b1 (f32) + red (bf16)
                 + 6 * tm * H * 4)       # f32 intermediates / headroom
    vmem_limit = int(min(vmem_cap // 2, max(16 * 1024 * 1024, vmem_need)))

    kernel = functools.partial(_ffn_kernel, approximate_gelu=approximate_gelu)

    logits_row = pl.pallas_call(
        kernel,
        grid=grid,
        out_shape=jax.ShapeDtypeStruct((1, B_pad), jnp.float32),
        in_specs=[
            pl.BlockSpec((tm, H), lambda i: (i, 0)),            # activation tile
            pl.BlockSpec((H, H), lambda i: (0, 0)),             # fc1 weight (resident)
            pl.BlockSpec((1, H), lambda i: (0, 0)),             # fc1 bias (resident)
            pl.BlockSpec((8, H), lambda i: (0, 0)),             # reduction mat (resident)
            pl.BlockSpec(memory_space=pltpu.MemorySpace.SMEM),  # [s, c] scalars
        ],
        out_specs=pl.BlockSpec((1, tm), lambda i: (0, i)),      # lane-dense logits
        compiler_params=pltpu.CompilerParams(
            dimension_semantics=("parallel",),
            vmem_limit_bytes=vmem_limit,
        ),
    )(x, w1_bf16, b1, red, scalars)

    # Grouped softmax over num_rows on the tiny (bs, num_rows) logits in XLA.
    logits = logits_row[0, :B].reshape(bs, num_rows)
    return jax.nn.softmax(logits, axis=-1)                      # == probs


def _reference_forward(input_ids, input_mask, params):
    """Pure-JAX f32 reference (matches the PyTorch module spec, exact erf GELU)."""
    bs, num_rows, seq_len = input_ids.shape
    flat_ids = input_ids.reshape(bs * num_rows, seq_len)
    cls = params["word_emb"][flat_ids[:, 0]].astype(jnp.float32)
    h = cls @ params["w1"] + params["b1"]
    a = h * 0.5 * (1.0 + jax.lax.erf(h / math.sqrt(2.0)))
    mu = jnp.mean(a, -1, keepdims=True)
    var = jnp.mean(jnp.square(a - mu), -1, keepdims=True)
    ln = (a - mu) / jnp.sqrt(var + 1e-5) * params["gamma"] + params["beta"]
    logits = jnp.sum(ln * params["w2"], -1, keepdims=True) + params["b2"]
    logits = logits.reshape(bs, num_rows)
    return jax.nn.softmax(logits, axis=-1)


def _init_params(key, vocab_size, hidden):
    ks = jax.random.split(key, 4)
    return {
        # bf16 embedding table: the kernel gathers bf16 rows directly (half the
        # HBM gather traffic, no separate f32->bf16 pass); the reference upcasts.
        "word_emb": (0.02 * jax.random.normal(
            ks[0], (vocab_size, hidden), jnp.float32)).astype(jnp.bfloat16),
        "w1": 0.05 * jax.random.normal(ks[1], (hidden, hidden), jnp.float32),
        "b1": 0.01 * jax.random.normal(ks[2], (1, hidden), jnp.float32),
        "gamma": jnp.ones((1, hidden), jnp.float32),
        "beta": jnp.zeros((1, hidden), jnp.float32),
        "w2": 0.05 * jax.random.normal(ks[3], (1, hidden), jnp.float32),
        "b2": jnp.zeros((1, 1), jnp.float32),
    }


if __name__ == "__main__":
    # bs*num_rows = 200 -> TM = 128, B padded to 256, grid = (2,):
    # exercises row padding, the multi-step parallel grid, and lane-dense stores.
    bs, num_rows, seq_len, hidden, vocab = 2, 100, 8, 32, 100

    key = jax.random.PRNGKey(0)
    k_ids, k_params = jax.random.split(key)
    input_ids = jax.random.randint(k_ids, (bs, num_rows, seq_len), 0, vocab,
                                   dtype=jnp.int32)
    input_mask = jnp.ones((bs, num_rows, seq_len), jnp.int32)
    params = _init_params(k_params, vocab, hidden)

    ref = _reference_forward(input_ids, input_mask, params)

    # Default path: EUP-friendly tanh-approx GELU (performance recommendation).
    probs = retrieve_model_forward(input_ids, input_mask, params)
    probs = jax.block_until_ready(probs)
    assert probs.shape == (bs, num_rows)
    # bf16 MXU operands + approx GELU vs f32/erf reference -> looser tolerance.
    assert jnp.allclose(probs, ref, atol=2e-3, rtol=1e-2)
    assert jnp.allclose(jnp.sum(probs, axis=-1), 1.0, atol=1e-4)

    # Exact-erf path (formula-identical to the PyTorch reference), gated flag.
    probs_exact = jax.block_until_ready(
        retrieve_model_forward(input_ids, input_mask, params,
                               approximate_gelu=False))
    assert jnp.allclose(probs_exact, ref, atol=2e-3, rtol=1e-2)

    print("KERNEL_OK")
</pallas_src>

<mosaic_0001>
module attributes {stable_mosaic.version = 11 : i64} {
  func.func @_ffn_kernel(%arg0: i32, %arg1: memref<128x32xbf16, #tpu.memory_space<vmem>>, %arg2: memref<32x32xbf16, #tpu.memory_space<vmem>>, %arg3: memref<1x32xf32, #tpu.memory_space<vmem>>, %arg4: memref<8x32xbf16, #tpu.memory_space<vmem>>, %arg5: memref<2xf32, #tpu.memory_space<smem>>, %arg6: memref<1x128xf32, #tpu.memory_space<vmem>>) attributes {dimension_semantics = [#tpu.dimension_semantics<parallel>], iteration_bounds = array<i64: 2>, scalar_prefetch = 0 : i64, scratch_operands = 0 : i64, tpu.core_type = #tpu.core_type<tc>, window_params = [{transform_indices = @transform_0, window_bounds = array<i64: 128, 32>}, {pipeline_mode = #tpu.pipeline_mode<synchronous>, transform_indices = @transform_1, window_bounds = array<i64: 32, 32>}, {pipeline_mode = #tpu.pipeline_mode<synchronous>, transform_indices = @transform_2, window_bounds = array<i64: 1, 32>}, {pipeline_mode = #tpu.pipeline_mode<synchronous>, transform_indices = @transform_3, window_bounds = array<i64: 8, 32>}, {transform_indices = @transform_4, window_bounds = array<i64: 2>}, {transform_indices = @transform_5, window_bounds = array<i64: 1, 128>}]} {
    %c0 = arith.constant 0 : index
    %c0_0 = arith.constant 0 : index
    %0 = vector.load %arg1[%c0, %c0_0] : memref<128x32xbf16, #tpu.memory_space<vmem>>, vector<128x32xbf16>
    %c0_1 = arith.constant 0 : index
    %c0_2 = arith.constant 0 : index
    %1 = vector.load %arg2[%c0_1, %c0_2] : memref<32x32xbf16, #tpu.memory_space<vmem>>, vector<32x32xbf16>
    %cst = arith.constant dense<0.000000e+00> : vector<128x32xf32>
    %2 = tpu.matmul %0, %1, %cst {dimension_numbers = #tpu.dot_dimension_numbers<[1], [0], [0], [1], [0, 0, 1, 1], [], []>} : vector<128x32xbf16>, vector<32x32xbf16>, vector<128x32xf32> -> vector<128x32xf32>
    %c0_3 = arith.constant 0 : index
    %c0_4 = arith.constant 0 : index
    %3 = vector.load %arg3[%c0_3, %c0_4] : memref<1x32xf32, #tpu.memory_space<vmem>>, vector<1x32xf32>
    %4 = vector.broadcast %3 : vector<1x32xf32> to vector<128x32xf32>
    %5 = arith.addf %2, %4 : vector<128x32xf32>
    %cst_5 = arith.constant 5.000000e-01 : f32
    %6 = vector.broadcast %cst_5 : f32 to vector<128x32xf32>
    %7 = arith.mulf %6, %5 : vector<128x32xf32>
    %8 = arith.mulf %5, %5 : vector<128x32xf32>
    %9 = arith.mulf %8, %5 : vector<128x32xf32>
    %cst_6 = arith.constant 4.471500e-02 : f32
    %10 = vector.broadcast %cst_6 : f32 to vector<128x32xf32>
    %11 = arith.mulf %10, %9 : vector<128x32xf32>
    %12 = arith.addf %5, %11 : vector<128x32xf32>
    %cst_7 = arith.constant 0.797884583 : f32
    %13 = vector.broadcast %cst_7 : f32 to vector<128x32xf32>
    %14 = arith.mulf %13, %12 : vector<128x32xf32>
    %15 = math.tanh %14 : vector<128x32xf32>
    %cst_8 = arith.constant 1.000000e+00 : f32
    %16 = vector.broadcast %cst_8 : f32 to vector<128x32xf32>
    %17 = arith.addf %16, %15 : vector<128x32xf32>
    %18 = arith.mulf %7, %17 : vector<128x32xf32>
    %19 = arith.truncf %18 : vector<128x32xf32> to vector<128x32xbf16>
    %20 = arith.mulf %18, %18 : vector<128x32xf32>
    %21 = arith.truncf %20 : vector<128x32xf32> to vector<128x32xbf16>
    %c0_9 = arith.constant 0 : index
    %c0_10 = arith.constant 0 : index
    %22 = vector.load %arg4[%c0_9, %c0_10] : memref<8x32xbf16, #tpu.memory_space<vmem>>, vector<8x32xbf16>
    %cst_11 = arith.constant dense<0.000000e+00> : vector<8x128xf32>
    %23 = tpu.matmul %22, %19, %cst_11 {dimension_numbers = #tpu.dot_dimension_numbers<[1], [1], [0], [0], [0, 0, 1, 0], [], []>} : vector<8x32xbf16>, vector<128x32xbf16>, vector<8x128xf32> -> vector<8x128xf32>
    %c0_12 = arith.constant 0 : index
    %c0_13 = arith.constant 0 : index
    %24 = vector.load %arg4[%c0_12, %c0_13] : memref<8x32xbf16, #tpu.memory_space<vmem>>, vector<8x32xbf16>
    %cst_14 = arith.constant dense<0.000000e+00> : vector<8x128xf32>
    %25 = tpu.matmul %24, %21, %cst_14 {dimension_numbers = #tpu.dot_dimension_numbers<[1], [1], [0], [0], [0, 0, 1, 0], [], []>} : vector<8x32xbf16>, vector<128x32xbf16>, vector<8x128xf32> -> vector<8x128xf32>
    %26 = vector.extract_strided_slice %23 {offsets = [0, 0], sizes = [1, 128], strides = [1, 1]} : vector<8x128xf32> to vector<1x128xf32>
    %27 = vector.extract_strided_slice %23 {offsets = [1, 0], sizes = [1, 128], strides = [1, 1]} : vector<8x128xf32> to vector<1x128xf32>
    %28 = vector.extract_strided_slice %25 {offsets = [1, 0], sizes = [1, 128], strides = [1, 1]} : vector<8x128xf32> to vector<1x128xf32>
    %29 = arith.mulf %27, %27 : vector<1x128xf32>
    %30 = arith.subf %28, %29 : vector<1x128xf32>
    %cst_15 = arith.constant 0.000000e+00 : f32
    %31 = vector.broadcast %cst_15 : f32 to vector<1x128xf32>
    %32 = arith.maximumf %30, %31 : vector<1x128xf32>
    %cst_16 = arith.constant 9.99999974E-6 : f32
    %33 = vector.broadcast %cst_16 : f32 to vector<1x128xf32>
    %34 = arith.addf %32, %33 : vector<1x128xf32>
    %35 = math.rsqrt %34 : vector<1x128xf32>
    %c0_17 = arith.constant 0 : index
    %36 = memref.load %arg5[%c0_17] : memref<2xf32, #tpu.memory_space<smem>>
    %c1 = arith.constant 1 : index
    %37 = memref.load %arg5[%c1] : memref<2xf32, #tpu.memory_space<smem>>
    %38 = vector.broadcast %36 : f32 to vector<1x128xf32>
    %39 = arith.mulf %27, %38 : vector<1x128xf32>
    %40 = arith.subf %26, %39 : vector<1x128xf32>
    %41 = arith.mulf %35, %40 : vector<1x128xf32>
    %42 = vector.broadcast %37 : f32 to vector<1x128xf32>
    %43 = arith.addf %41, %42 : vector<1x128xf32>
    %c0_18 = arith.constant 0 : index
    %c0_19 = arith.constant 0 : index
    %44 = vector.load %arg6[%c0_18, %c0_19] : memref<1x128xf32, #tpu.memory_space<vmem>>, vector<1x128xf32>
    tpu.vector_store %arg6[%c0_18, %c0_19], %43 {strides = array<i32>} : memref<1x128xf32, #tpu.memory_space<vmem>>, vector<1x128xf32>,
    return
  }
  func.func @transform_0(%arg0: i32) -> (i32, i32) {
    %c0_i32 = arith.constant 0 : i32
    %c0_i32_0 = arith.constant 0 : i32
    return %arg0, %c0_i32 : i32, i32
  }
  func.func @transform_1(%arg0: i32) -> (i32, i32) {
    %c0_i32 = arith.constant 0 : i32
    %c0_i32_0 = arith.constant 0 : i32
    %c0_i32_1 = arith.constant 0 : i32
    return %c0_i32, %c0_i32_0 : i32, i32
  }
  func.func @transform_2(%arg0: i32) -> (i32, i32) {
    %c0_i32 = arith.constant 0 : i32
    %c0_i32_0 = arith.constant 0 : i32
    %c0_i32_1 = arith.constant 0 : i32
    return %c0_i32, %c0_i32_0 : i32, i32
  }
  func.func @transform_3(%arg0: i32) -> (i32, i32) {
    %c0_i32 = arith.constant 0 : i32
    %c0_i32_0 = arith.constant 0 : i32
    %c0_i32_1 = arith.constant 0 : i32
    return %c0_i32, %c0_i32_0 : i32, i32
  }
  func.func @transform_4(%arg0: i32) -> i32 {
    %c0_i32 = arith.constant 0 : i32
    %c0_i32_0 = arith.constant 0 : i32
    return %c0_i32 : i32
  }
  func.func @transform_5(%arg0: i32) -> (i32, i32) {
    %c0_i32 = arith.constant 0 : i32
    %c0_i32_0 = arith.constant 0 : i32
    return %c0_i32, %arg0 : i32, i32
  }
}

</mosaic_0001>

<llo_original>
// kernel: tpu_custom_call.1
$region0: #{tpu_custom_call.1}
  #allocation0 [shape = 'u32[]', space=smem, size = 0x4, offset = 0x4, fixed_abs, tag = 'smem constant byte address 0x4 - core index']
  #allocation1 [shape = 'u32[144,128]{1,0:T(1,128)}', space=vmem, size = 0x12000, scoped, tag = 'internal scratch']
  %s0 = inlined_call_operand.vmem [shape: bf16[256,32], index: 0, kind: input, shape index: {}]
  %s1 = inlined_call_operand.vmem [shape: bf16[32,32], index: 1, kind: input, shape index: {}]
  %s2 = inlined_call_operand.vmem [shape: f32[1,32], index: 2, kind: input, shape index: {}]
  %s3 = inlined_call_operand.vmem [shape: bf16[8,32], index: 3, kind: input, shape index: {}]
  %s4 = inlined_call_operand.vmem [shape: f32[2], index: 4, kind: input, shape index: {}]
  %s5 = inlined_call_operand.hbm [shape: f32[1,256], index: 5, kind: output, shape index: {}]
  %s6 = sld [smem:[#allocation0]]
  $region57: #{tpu_custom_call.1} parent=0
    _
  %s8 = ssub.s32 1, %s6
  %s9 = scalar_select 0, %s8, %s6
  $region1: #{tpu_custom_call.1} parent=0
    #allocation2 [shape = 'u8[512]{0}', space=smem, size = 0x200, scoped, tag = 'input window, operand 4, single buffered']
    #allocation3 [shape = 's32[2]{0}', space=sflag, size = 0x8, scoped, tag = 'scoped memory for tpu_custom_call.1']
    #allocation4 [shape = 's32[2]{0}', space=sflag, size = 0x8, scoped, tag = 'scoped memory for tpu_custom_call.1']
    #allocation5 [shape = 'u8[1024]{0}', space=vmem, size = 0x400, scoped, tag = 'output window, operand 0']
    %10 = vsyncpa [#allocation4], 0
    %11 = vsyncpa [#allocation3], 0
    %s12 = scalar_lea.sflag [#allocation3], 1
    %13 = vsyncpa %s12, 0
    loop: start=0, step=1, limit=4
    $region2: #{tpu_custom_call.1} parent=1 // loop_pre_header
      _
    $region3: #{tpu_custom_call.1} parent=1 // loop_header
      %s15 = sphi 0, %s19
      %p16 = scmp.ge.s32.totalorder %s15, 4
      %s25 = sphi 0, %s27
      %s28 = sphi 0, %s25
      %s29 = sphi 0, %s28
      %s45 = sphi 0, %s29
      %s49 = sphi 0, %s49
      %s51 = sphi 0, %s49
      %s52 = sphi 0, %s51
      %s66 = sphi 0, %s52
      %s70 = sphi 0, %s70
      %s72 = sphi 0, %s70
      %s73 = sphi 0, %s72
      %s87 = sphi 0, %s73
      %s91 = sphi 0, %s91
      %s93 = sphi 0, %s91
      %s94 = sphi 0, %s93
      %s108 = sphi 0, %s94
      %s112 = sphi 0, %s112
      %s114 = sphi 0, %s112
      %s115 = sphi 0, %s114
      %s129 = sphi 0, %s115
      %s135 = sphi 0, %s137
      %s138 = sphi 0, %s135
      %s139 = sphi 0, %s138
      %s155 = sphi 0, %s139
    $region4: #{tpu_custom_call.1} parent=1 // loop_header_branch
      %18 = sbr.rel (%p16) target = $region8
    $region5: #{tpu_custom_call.1} parent=1 // loop_body
      %s20 = ssub.s32 %s15, 1
      %s21 = ssub.s32 %s15, 2
      %s22 = sadd.s32 %s15, 1
      %s23 = ssub.s32 %s15, %s22
      %p24 = scmp.eq.s32.totalorder %s23, 0
      %s26 = sadd.s32 %s25, 1
      %s27 = scalar_select %p24, %s25, %s26
      %p30 = pneg %p24
      %p31 = scmp.eq.s32.totalorder %s15, 1
      %p32 = por %p30, %p31
      %p33 = scmp.ne.s32.totalorder %s25, %s28
      %p34 = scmp.eq.s32.totalorder %s15, 0
      %p35 = por %p33, %p34
      %p36 = scmp.ne.s32.totalorder %s25, %s28
      %p37 = scmp.eq.s32.totalorder %s20, 1
      %p38 = por %p36, %p37
      %p39 = scmp.ne.s32.totalorder %s28, %s29
      %p40 = scmp.eq.s32.totalorder %s20, 0
      %p41 = por %p39, %p40
      %p42 = scmp.ne.s32.totalorder %s28, %s29
      %p43 = scmp.eq.s32.totalorder %s21, 1
      %p44 = por %p42, %p43
      %p46 = scmp.ne.s32.totalorder %s29, %s45
      %p47 = scmp.eq.s32.totalorder %s21, 0
      %p48 = por %p46, %p47
      %s50 = sadd.s32 %s49, 1
      %p53 = scmp.eq.s32.totalorder %s15, 1
      %p54 = scmp.ne.s32.totalorder %s49, %s51
      %p55 = scmp.eq.s32.totalorder %s15, 0
      %p56 = por %p54, %p55
      %p57 = scmp.ne.s32.totalorder %s49, %s51
      %p58 = scmp.eq.s32.totalorder %s20, 1
      %p59 = por %p57, %p58
      %p60 = scmp.ne.s32.totalorder %s51, %s52
      %p61 = scmp.eq.s32.totalorder %s20, 0
      %p62 = por %p60, %p61
      %p63 = scmp.ne.s32.totalorder %s51, %s52
      %p64 = scmp.eq.s32.totalorder %s21, 1
      %p65 = por %p63, %p64
      %p67 = scmp.ne.s32.totalorder %s52, %s66
      %p68 = scmp.eq.s32.totalorder %s21, 0
      %p69 = por %p67, %p68
      %s71 = sadd.s32 %s70, 1
      %p74 = scmp.eq.s32.totalorder %s15, 1
      %p75 = scmp.ne.s32.totalorder %s70, %s72
      %p76 = scmp.eq.s32.totalorder %s15, 0
      %p77 = por %p75, %p76
      %p78 = scmp.ne.s32.totalorder %s70, %s72
      %p79 = scmp.eq.s32.totalorder %s20, 1
      %p80 = por %p78, %p79
      %p81 = scmp.ne.s32.totalorder %s72, %s73
      %p82 = scmp.eq.s32.totalorder %s20, 0
      %p83 = por %p81, %p82
      %p84 = scmp.ne.s32.totalorder %s72, %s73
      %p85 = scmp.eq.s32.totalorder %s21, 1
      %p86 = por %p84, %p85
      %p88 = scmp.ne.s32.totalorder %s73, %s87
      %p89 = scmp.eq.s32.totalorder %s21, 0
      %p90 = por %p88, %p89
      %s92 = sadd.s32 %s91, 1
      %p95 = scmp.eq.s32.totalorder %s15, 1
      %p96 = scmp.ne.s32.totalorder %s91, %s93
      %p97 = scmp.eq.s32.totalorder %s15, 0
      %p98 = por %p96, %p97
      %p99 = scmp.ne.s32.totalorder %s91, %s93
      %p100 = scmp.eq.s32.totalorder %s20, 1
      %p101 = por %p99, %p100
      %p102 = scmp.ne.s32.totalorder %s93, %s94
      %p103 = scmp.eq.s32.totalorder %s20, 0
      %p104 = por %p102, %p103
      %p105 = scmp.ne.s32.totalorder %s93, %s94
      %p106 = scmp.eq.s32.totalorder %s21, 1
      %p107 = por %p105, %p106
      %p109 = scmp.ne.s32.totalorder %s94, %s108
      %p110 = scmp.eq.s32.totalorder %s21, 0
      %p111 = por %p109, %p110
      %s113 = sadd.s32 %s112, 1
      %p116 = scmp.eq.s32.totalorder %s15, 1
      %p117 = scmp.ne.s32.totalorder %s112, %s114
      %p118 = scmp.eq.s32.totalorder %s15, 0
      %p119 = por %p117, %p118
      %p120 = scmp.ne.s32.totalorder %s112, %s114
      %p121 = scmp.eq.s32.totalorder %s20, 1
      %p122 = por %p120, %p121
      %p123 = scmp.ne.s32.totalorder %s114, %s115
      %p124 = scmp.eq.s32.totalorder %s20, 0
      %p125 = por %p123, %p124
      %p126 = scmp.ne.s32.totalorder %s114, %s115
      %p127 = scmp.eq.s32.totalorder %s21, 1
      %p128 = por %p126, %p127
      %p130 = scmp.ne.s32.totalorder %s115, %s129
      %p131 = scmp.eq.s32.totalorder %s21, 0
      %p132 = por %p130, %p131
      %s133 = ssub.s32 %s15, %s22
      %p134 = scmp.eq.s32.totalorder %s133, 0
      %s136 = sadd.s32 %s135, 1
      %s137 = scalar_select %p134, %s135, %s136
      %p140 = pneg %p134
      %p141 = scmp.eq.s32.totalorder %s15, 1
      %p142 = por %p140, %p141
      %p143 = scmp.ne.s32.totalorder %s135, %s138
      %p144 = scmp.eq.s32.totalorder %s15, 0
      %p145 = por %p143, %p144
      %p146 = scmp.ne.s32.totalorder %s135, %s138
      %p147 = scmp.eq.s32.totalorder %s20, 1
      %p148 = por %p146, %p147
      %p149 = scmp.ne.s32.totalorder %s138, %s139
      %p150 = scmp.eq.s32.totalorder %s20, 0
      %p151 = por %p149, %p150
      %p152 = scmp.ne.s32.totalorder %s138, %s139
      %p153 = scmp.eq.s32.totalorder %s21, 1
      %p154 = por %p152, %p153
      %p156 = scmp.ne.s32.totalorder %s139, %s155
      %p157 = scmp.eq.s32.totalorder %s21, 0
      %p158 = por %p156, %p157
      %p159 = scmp.le.s32.totalorder 1, %s15
      %p160 = scmp.lt.s32.totalorder %s15, 3
      %p161 = pnand %p159, %p160
      %p162 = pneg %p161
      // Predicated region
      $region9: #{tpu_custom_call.1} parent=5 // pred_check
        _
      $region10: #{tpu_custom_call.1} parent=5 // pred_check_branch
        %164 = sbr.rel (%p161) target = $region12
      $region11: #{tpu_custom_call.1} parent=5 // pred_region
        %s165 = ssub.s32 %s15, 1
        // Predicated region
        $region13: #{tpu_custom_call.1} parent=11 // pred_check
          %p166 = pneg %p62
        $region14: #{tpu_custom_call.1} parent=11 // pred_check_branch
          %168 = sbr.rel (%p166) target = $region16
        $region15: #{tpu_custom_call.1} parent=11 // pred_region
          _
        $region16: #{tpu_custom_call.1} parent=11 // pred_fallthru
          _
        // Predicated region
        $region17: #{tpu_custom_call.1} parent=11 // pred_check
          %p169 = pneg %p83
        $region18: #{tpu_custom_call.1} parent=11 // pred_check_branch
          %171 = sbr.rel (%p169) target = $region20
        $region19: #{tpu_custom_call.1} parent=11 // pred_region
          _
        $region20: #{tpu_custom_call.1} parent=11 // pred_fallthru
          _
        // Predicated region
        $region21: #{tpu_custom_call.1} parent=11 // pred_check
          %p172 = pneg %p104
        $region22: #{tpu_custom_call.1} parent=11 // pred_check_branch
          %174 = sbr.rel (%p172) target = $region24
        $region23: #{tpu_custom_call.1} parent=11 // pred_region
          _
        $region24: #{tpu_custom_call.1} parent=11 // pred_fallthru
          _
        // Predicated region
        $region25: #{tpu_custom_call.1} parent=11 // pred_check
          %p175 = pneg %p125
        $region26: #{tpu_custom_call.1} parent=11 // pred_check_branch
          %177 = sbr.rel (%p175) target = $region28
        $region27: #{tpu_custom_call.1} parent=11 // pred_region
          %s179 = ssub.s32 16, 16
          %180 = vsyncadd [#allocation4], %s179
          %s182 = sshll.u32 %s4, 4
          %s183 = int_to_ptr.vmem [resolvable:$true] %s182
          %185 = dma.vmem_to_smem %s183, 16, [#allocation2], [#allocation4]
        $region28: #{tpu_custom_call.1} parent=11 // pred_fallthru
          _
      $region12: #{tpu_custom_call.1} parent=5 // pred_fallthru
        _
      %p186 = scmp.lt.s32.totalorder %s15, 2
      // Predicated region
      $region29: #{tpu_custom_call.1} parent=5 // pred_check
        %p187 = pneg %p186
      $region30: #{tpu_custom_call.1} parent=5 // pred_check_branch
        %189 = sbr.rel (%p187) target = $region32
      $region31: #{tpu_custom_call.1} parent=5 // pred_region
        // Predicated region
        $region33: #{tpu_custom_call.1} parent=31 // pred_check
          %p190 = pneg %p35
        $region34: #{tpu_custom_call.1} parent=31 // pred_check_branch
          %192 = sbr.rel (%p190) target = $region36
        $region35: #{tpu_custom_call.1} parent=31 // pred_region
          %s193 = smul.u32 16, %s15
          %p194 = scmp.lt.s32.totalorder %s193, 31
          %s195 = scalar_select %p194, %s193, 31
          %s196 = smul.addr %s195, 4
          %s197 = scalar_lea.vmem %s0, %s196
          %s198 = smul.u32 16, %s15
        $region36: #{tpu_custom_call.1} parent=31 // pred_fallthru
          _
      $region32: #{tpu_custom_call.1} parent=5 // pred_fallthru
        _
      %p199 = scmp.le.s32.totalorder 1, %s15
      %p200 = scmp.lt.s32.totalorder %s15, 3
      %p201 = pnand %p199, %p200
      %p202 = pneg %p201
      // Predicated region
      $region37: #{tpu_custom_call.1} parent=5 // pred_check
        _
      $region38: #{tpu_custom_call.1} parent=5 // pred_check_branch
        %204 = sbr.rel (%p201) target = $region40
      $region39: #{tpu_custom_call.1} parent=5 // pred_region
        %s205 = ssub.s32 %s15, 1
        // Predicated region
        $region41: #{tpu_custom_call.1} parent=39 // pred_check
          %p206 = pneg %p125
        $region42: #{tpu_custom_call.1} parent=39 // pred_check_branch
          %208 = sbr.rel (%p206) target = $region44
        $region43: #{tpu_custom_call.1} parent=39 // pred_region
          %209 = dma.done [#allocation4], 16
        $region44: #{tpu_custom_call.1} parent=39 // pred_fallthru
          _
        %210 = sfence
        %s211 = smul.u32 16, %s20
        %p212 = scmp.lt.s32.totalorder %s211, 31
        %s213 = scalar_select %p212, %s211, 31
        %s214 = smul.addr %s213, 4
        %s215 = scalar_lea.vmem %s0, %s214
        %p216 = pneg %p41
        %p217 = pneg %p38
        %p218 = pneg %p62
        %p219 = pneg %p59
        %p220 = pneg %p83
        %p221 = pneg %p80
        %p222 = pneg %p104
        %p223 = pneg %p101
        %p224 = pneg %p125
        %p225 = pneg %p122
        %p226 = pneg %p151
        %p227 = pneg %p148
        %s228 = sand.u32 %s138, 1
        %s229 = scalar_lea.sflag [#allocation3], %s228
        %s230 = sand.u32 %s138, 1
        %s231 = scalar_lea.vmem [#allocation5], %s230
        %s232 = smul.u32 16, %s20
        %p233 = scmp.lt.s32.totalorder %s232, 31
        %s234 = scalar_select %p233, %s232, 31
        %s235 = smul.addr %s234, 4
        %s236 = scalar_lea.vmem %s0, %s235
        %s237 = smul.u32 16, %s20
        %v239 = vld [vmem:[%s236] sm:$0xf]
        %v240 = vld [vmem:[%s236 + $0x4] sm:$0xf]
        %v241 = vld [vmem:[%s236 + $0x8] sm:$0xf]
        %v242 = vld [vmem:[%s236 + $0xc] sm:$0xf]
        %v243 = vld [vmem:[%s236 + $0x10] sm:$0xf]
        %v244 = vld [vmem:[%s236 + $0x14] sm:$0xf]
        %v245 = vld [vmem:[%s236 + $0x18] sm:$0xf]
        %v246 = vld [vmem:[%s236 + $0x1c] sm:$0xf]
        %v247 = vld [vmem:[%s236 + $0x20] sm:$0xf]
        %v248 = vld [vmem:[%s236 + $0x24] sm:$0xf]
        %v249 = vld [vmem:[%s236 + $0x28] sm:$0xf]
        %v250 = vld [vmem:[%s236 + $0x2c] sm:$0xf]
        %v251 = vld [vmem:[%s236 + $0x30] sm:$0xf]
        %v252 = vld [vmem:[%s236 + $0x34] sm:$0xf]
        %v253 = vld [vmem:[%s236 + $0x38] sm:$0xf]
        %v254 = vld [vmem:[%s236 + $0x3c] sm:$0xf]
        %v255 = vld [vmem:[%s1] sm:$0xf]
        %v256 = vld [vmem:[%s1 + $0x4] sm:$0xf]
        %v257 = vld [vmem:[%s1 + $0x8] sm:$0xf]
        %v258 = vld [vmem:[%s1 + $0xc] sm:$0xf]
        %v259 = vld [vmem:[%s2] sm:$0x1]
        %v261 = vlaneseq
        %v262 = vshrl.u32 %v261, 7
        %v263 = vsub.s32 0, %v262
        %v264 = vrot.slane %v259, %v263
        %v282 = vunpack.c.l.b16 %v239
        %v283 = vunpack.c.l.b16 %v240
        %v284 = vunpack.c.l.b16 %v241
        %v285 = vunpack.c.l.b16 %v242
        %v286 = vunpack.c.l.b16 %v243
        %v287 = vunpack.c.l.b16 %v244
        %v288 = vunpack.c.l.b16 %v245
        %v289 = vunpack.c.l.b16 %v246
        %v290 = vunpack.c.l.b16 %v247
        %v291 = vunpack.c.l.b16 %v248
        %v292 = vunpack.c.l.b16 %v249
        %v293 = vunpack.c.l.b16 %v250
        %v294 = vunpack.c.l.b16 %v251
        %v295 = vunpack.c.l.b16 %v252
        %v296 = vunpack.c.l.b16 %v253
        %v297 = vunpack.c.l.b16 %v254
        %v298 = vpack.c.b16 %v283, %v282
        %v299 = vpack.c.b16 %v285, %v284
        %v300 = vpack.c.b16 %v287, %v286
        %v301 = vpack.c.b16 %v289, %v288
        %v302 = vpack.c.b16 %v291, %v290
        %v303 = vpack.c.b16 %v293, %v292
        %v304 = vpack.c.b16 %v295, %v294
        %v305 = vpack.c.b16 %v297, %v296
        %v310 = vunpack.c.l.b16 %v255
        %v311 = vunpack.c.l.b16 %v256
        %v312 = vunpack.c.l.b16 %v257
        %v313 = vunpack.c.l.b16 %v258
        %v314 = vpack.c.b16 %v311, %v310
        %v315 = vpack.c.b16 %v313, %v312
        %vm318 = vcmask 261120
        %v320 = vsel %vm318, %v298, 0
        %v323 = vsel %vm318, %v299, 0
        %v326 = vsel %vm318, %v300, 0
        %v329 = vsel %vm318, %v301, 0
        %v332 = vsel %vm318, %v302, 0
        %v335 = vsel %vm318, %v303, 0
        %v338 = vsel %vm318, %v304, 0
        %v341 = vsel %vm318, %v305, 0
        %343 = vmatprep.subr.bf16.mxu0 0
        %344 = vmatpush1.bf16.msra.mxu0 0
        %345 = vmatprep.subr.bf16.mxu0 0
        %346 = vmatpush1.bf16.msra.mxu0 0
        %347 = vmatprep.subr.bf16.mxu0 0
        %348 = vmatpush1.bf16.msra.mxu0 0
        %349 = vmatprep.subr.bf16.mxu0 0
        %350 = vmatpush1.bf16.msra.mxu0 0
        %351 = vmatprep.subr.bf16.mxu0 0
        %352 = vmatpush1.bf16.msra.mxu0 0
        %353 = vmatprep.subr.bf16.mxu0 0
        %354 = vmatpush1.bf16.msra.mxu0 0
        %355 = vmatprep.subr.bf16.mxu0 0
        %356 = vmatpush1.bf16.msra.mxu0 %v315
        %357 = vmatprep.subr.bf16.mxu0 0
        %358 = vmatpush1.bf16.msra.mxu0 %v314
        %359 = vmatprep.subr.bf16.mxu0 0
        %360 = vmatpush2.bf16.msra.mxu0 0
        %361 = vmatprep.subr.bf16.mxu0 0
        %362 = vmatpush2.bf16.msra.mxu0 0
        %363 = vmatprep.subr.bf16.mxu0 0
        %364 = vmatpush2.bf16.msra.mxu0 0
        %365 = vmatprep.subr.bf16.mxu0 0
        %366 = vmatpush2.bf16.msra.mxu0 0
        %367 = vmatprep.subr.bf16.mxu0 0
        %368 = vmatpush2.bf16.msra.mxu0 0
        %369 = vmatprep.subr.bf16.mxu0 0
        %370 = vmatpush2.bf16.msra.mxu0 0
        %371 = vmatprep.subr.bf16.mxu0 0
        %372 = vmatpush2.bf16.msra.mxu0 0
        %373 = vmatprep.subr.bf16.mxu0 0
        %374 = vmatpush2.bf16.msra.mxu0 0
        %375 = vmatprep.mubr.bf16.mxu0 0
        %376 = vmatmul.mubr.bf16.gmra.mxu0 %v320
        %v377 = vpop.f32.mrf.mxu0
        %v378 = vadd.f32 %v264, %v377
        %v379 = vpop.f32.mrf.mxu0
        %v380 = vpop.f32.mrf.mxu0
        %v381 = vadd.f32 %v264, %v380
        %v382 = vpop.f32.mrf.mxu0
        %383 = vmatprep.mubr.bf16.mxu0 0
        %384 = vmatmul.mubr.bf16.gmra.mxu0 %v323
        %v385 = vpop.f32.mrf.mxu0
        %v386 = vadd.f32 %v264, %v385
        %v387 = vpop.f32.mrf.mxu0
        %v388 = vpop.f32.mrf.mxu0
        %v389 = vadd.f32 %v264, %v388
        %v390 = vpop.f32.mrf.mxu0
        %391 = vmatprep.mubr.bf16.mxu0 0
        %392 = vmatmul.mubr.bf16.gmra.mxu0 %v326
        %v393 = vpop.f32.mrf.mxu0
        %v394 = vadd.f32 %v264, %v393
        %v395 = vpop.f32.mrf.mxu0
        %v396 = vpop.f32.mrf.mxu0
        %v397 = vadd.f32 %v264, %v396
        %v398 = vpop.f32.mrf.mxu0
        %399 = vmatprep.mubr.bf16.mxu0 0
        %400 = vmatmul.mubr.bf16.gmra.mxu0 %v329
        %v401 = vpop.f32.mrf.mxu0
        %v402 = vadd.f32 %v264, %v401
        %v403 = vpop.f32.mrf.mxu0
        %v404 = vpop.f32.mrf.mxu0
        %v405 = vadd.f32 %v264, %v404
        %v406 = vpop.f32.mrf.mxu0
        %407 = vmatprep.mubr.bf16.mxu0 0
        %408 = vmatmul.mubr.bf16.gmra.mxu0 %v332
        %v409 = vpop.f32.mrf.mxu0
        %v410 = vadd.f32 %v264, %v409
        %v411 = vpop.f32.mrf.mxu0
        %v412 = vpop.f32.mrf.mxu0
        %v413 = vadd.f32 %v264, %v412
        %v414 = vpop.f32.mrf.mxu0
        %415 = vmatprep.mubr.bf16.mxu0 0
        %416 = vmatmul.mubr.bf16.gmra.mxu0 %v335
        %v417 = vpop.f32.mrf.mxu0
        %v418 = vadd.f32 %v264, %v417
        %v419 = vpop.f32.mrf.mxu0
        %v420 = vpop.f32.mrf.mxu0
        %v421 = vadd.f32 %v264, %v420
        %v422 = vpop.f32.mrf.mxu0
        %423 = vmatprep.mubr.bf16.mxu0 0
        %424 = vmatmul.mubr.bf16.gmra.mxu0 %v338
        %v425 = vpop.f32.mrf.mxu0
        %v426 = vadd.f32 %v264, %v425
        %v427 = vpop.f32.mrf.mxu0
        %v428 = vpop.f32.mrf.mxu0
        %v429 = vadd.f32 %v264, %v428
        %v430 = vpop.f32.mrf.mxu0
        %431 = vmatprep.mubr.bf16.mxu0 0
        %432 = vmatmul.mubr.bf16.gmra.mxu0 %v341
        %v433 = vpop.f32.mrf.mxu0
        %v434 = vadd.f32 %v264, %v433
        %v435 = vpop.f32.mrf.mxu0
        %v436 = vpop.f32.mrf.mxu0
        %v437 = vadd.f32 %v264, %v436
        %v438 = vpop.f32.mrf.mxu0
        %439 = vdwg.mxu0
        %v440 = vmul.f32 %v378, 0.5
        %v441 = vmul.f32 %v381, 0.5
        %v442 = vmul.f32 %v386, 0.5
        %v443 = vmul.f32 %v389, 0.5
        %v444 = vmul.f32 %v394, 0.5
        %v445 = vmul.f32 %v397, 0.5
        %v446 = vmul.f32 %v402, 0.5
        %v447 = vmul.f32 %v405, 0.5
        %v448 = vmul.f32 %v410, 0.5
        %v449 = vmul.f32 %v413, 0.5
        %v450 = vmul.f32 %v418, 0.5
        %v451 = vmul.f32 %v421, 0.5
        %v452 = vmul.f32 %v426, 0.5
        %v453 = vmul.f32 %v429, 0.5
        %v454 = vmul.f32 %v434, 0.5
        %v455 = vmul.f32 %v437, 0.5
        %v456 = vmul.f32 %v378, %v378
        %v457 = vmul.f32 %v381, %v381
        %v458 = vmul.f32 %v386, %v386
        %v459 = vmul.f32 %v389, %v389
        %v460 = vmul.f32 %v394, %v394
        %v461 = vmul.f32 %v397, %v397
        %v462 = vmul.f32 %v402, %v402
        %v463 = vmul.f32 %v405, %v405
        %v464 = vmul.f32 %v410, %v410
        %v465 = vmul.f32 %v413, %v413
        %v466 = vmul.f32 %v418, %v418
        %v467 = vmul.f32 %v421, %v421
        %v468 = vmul.f32 %v426, %v426
        %v469 = vmul.f32 %v429, %v429
        %v470 = vmul.f32 %v434, %v434
        %v471 = vmul.f32 %v437, %v437
        %v472 = vmul.f32 %v456, %v378
        %v473 = vmul.f32 %v457, %v381
        %v474 = vmul.f32 %v458, %v386
        %v475 = vmul.f32 %v459, %v389
        %v476 = vmul.f32 %v460, %v394
        %v477 = vmul.f32 %v461, %v397
        %v478 = vmul.f32 %v462, %v402
        %v479 = vmul.f32 %v463, %v405
        %v480 = vmul.f32 %v464, %v410
        %v481 = vmul.f32 %v465, %v413
        %v482 = vmul.f32 %v466, %v418
        %v483 = vmul.f32 %v467, %v421
        %v484 = vmul.f32 %v468, %v426
        %v485 = vmul.f32 %v469, %v429
        %v486 = vmul.f32 %v470, %v434
        %v487 = vmul.f32 %v471, %v437
        %v488 = vmul.f32 %v472, 0.044715
        %v489 = vmul.f32 %v473, 0.044715
        %v490 = vmul.f32 %v474, 0.044715
        %v491 = vmul.f32 %v475, 0.044715
        %v492 = vmul.f32 %v476, 0.044715
        %v493 = vmul.f32 %v477, 0.044715
        %v494 = vmul.f32 %v478, 0.044715
        %v495 = vmul.f32 %v479, 0.044715
        %v496 = vmul.f32 %v480, 0.044715
        %v497 = vmul.f32 %v481, 0.044715
        %v498 = vmul.f32 %v482, 0.044715
        %v499 = vmul.f32 %v483, 0.044715
        %v500 = vmul.f32 %v484, 0.044715
        %v501 = vmul.f32 %v485, 0.044715
        %v502 = vmul.f32 %v486, 0.044715
        %v503 = vmul.f32 %v487, 0.044715
        %v504 = vadd.f32 %v378, %v488
        %v505 = vadd.f32 %v381, %v489
        %v506 = vadd.f32 %v386, %v490
        %v507 = vadd.f32 %v389, %v491
        %v508 = vadd.f32 %v394, %v492
        %v509 = vadd.f32 %v397, %v493
        %v510 = vadd.f32 %v402, %v494
        %v511 = vadd.f32 %v405, %v495
        %v512 = vadd.f32 %v410, %v496
        %v513 = vadd.f32 %v413, %v497
        %v514 = vadd.f32 %v418, %v498
        %v515 = vadd.f32 %v421, %v499
        %v516 = vadd.f32 %v426, %v500
        %v517 = vadd.f32 %v429, %v501
        %v518 = vadd.f32 %v434, %v502
        %v519 = vadd.f32 %v437, %v503
        %v520 = vmul.f32 %v504, 0.7978846
        %v521 = vmul.f32 %v505, 0.7978846
        %v522 = vmul.f32 %v506, 0.7978846
        %v523 = vmul.f32 %v507, 0.7978846
        %v524 = vmul.f32 %v508, 0.7978846
        %v525 = vmul.f32 %v509, 0.7978846
        %v526 = vmul.f32 %v510, 0.7978846
        %v527 = vmul.f32 %v511, 0.7978846
        %v528 = vmul.f32 %v512, 0.7978846
        %v529 = vmul.f32 %v513, 0.7978846
        %v530 = vmul.f32 %v514, 0.7978846
        %v531 = vmul.f32 %v515, 0.7978846
        %v532 = vmul.f32 %v516, 0.7978846
        %v533 = vmul.f32 %v517, 0.7978846
        %v534 = vmul.f32 %v518, 0.7978846
        %v535 = vmul.f32 %v519, 0.7978846
        %v536 = vtanh.pop %v520
        %v537 = vtanh.pop %v521
        %v538 = vtanh.pop %v522
        %v539 = vtanh.pop %v523
        %v540 = vtanh.pop %v524
        %v541 = vtanh.pop %v525
        %v542 = vtanh.pop %v526
        %v543 = vtanh.pop %v527
        %v544 = vtanh.pop %v528
        %v545 = vtanh.pop %v529
        %v546 = vtanh.pop %v530
        %v547 = vtanh.pop %v531
        %v548 = vtanh.pop %v532
        %v549 = vtanh.pop %v533
        %v550 = vtanh.pop %v534
        %v551 = vtanh.pop %v535
        %v552 = vadd.f32 %v536, 1.0
        %v553 = vadd.f32 %v537, 1.0
        %v554 = vadd.f32 %v538, 1.0
        %v555 = vadd.f32 %v539, 1.0
        %v556 = vadd.f32 %v540, 1.0
        %v557 = vadd.f32 %v541, 1.0
        %v558 = vadd.f32 %v542, 1.0
        %v559 = vadd.f32 %v543, 1.0
        %v560 = vadd.f32 %v544, 1.0
        %v561 = vadd.f32 %v545, 1.0
        %v562 = vadd.f32 %v546, 1.0
        %v563 = vadd.f32 %v547, 1.0
        %v564 = vadd.f32 %v548, 1.0
        %v565 = vadd.f32 %v549, 1.0
        %v566 = vadd.f32 %v550, 1.0
        %v567 = vadd.f32 %v551, 1.0
        %v568 = vmul.f32 %v440, %v552
        %v569 = vmul.f32 %v441, %v553
        %v570 = vmul.f32 %v442, %v554
        %v571 = vmul.f32 %v443, %v555
        %v572 = vmul.f32 %v444, %v556
        %v573 = vmul.f32 %v445, %v557
        %v574 = vmul.f32 %v446, %v558
        %v575 = vmul.f32 %v447, %v559
        %v576 = vmul.f32 %v448, %v560
        %v577 = vmul.f32 %v449, %v561
        %v578 = vmul.f32 %v450, %v562
        %v579 = vmul.f32 %v451, %v563
        %v580 = vmul.f32 %v452, %v564
        %v581 = vmul.f32 %v453, %v565
        %v582 = vmul.f32 %v454, %v566
        %v583 = vmul.f32 %v455, %v567
        %v584 = vpack.c.bf16 %v569, %v568
        %v585 = vpack.c.bf16 %v571, %v570
        %v586 = vpack.c.bf16 %v573, %v572
        %v587 = vpack.c.bf16 %v575, %v574
        %v588 = vpack.c.bf16 %v577, %v576
        %v589 = vpack.c.bf16 %v579, %v578
        %v590 = vpack.c.bf16 %v581, %v580
        %v591 = vpack.c.bf16 %v583, %v582
        %v592 = vmul.f32 %v568, %v568
        %v593 = vmul.f32 %v569, %v569
        %v594 = vmul.f32 %v570, %v570
        %v595 = vmul.f32 %v571, %v571
        %v596 = vmul.f32 %v572, %v572
        %v597 = vmul.f32 %v573, %v573
        %v598 = vmul.f32 %v574, %v574
        %v599 = vmul.f32 %v575, %v575
        %v600 = vmul.f32 %v576, %v576
        %v601 = vmul.f32 %v577, %v577
        %v602 = vmul.f32 %v578, %v578
        %v603 = vmul.f32 %v579, %v579
        %v604 = vmul.f32 %v580, %v580
        %v605 = vmul.f32 %v581, %v581
        %v606 = vmul.f32 %v582, %v582
        %v607 = vmul.f32 %v583, %v583
        %v608 = vpack.c.bf16 %v593, %v592
        %v609 = vpack.c.bf16 %v595, %v594
        %v610 = vpack.c.bf16 %v597, %v596
        %v611 = vpack.c.bf16 %v599, %v598
        %v612 = vpack.c.bf16 %v601, %v600
        %v613 = vpack.c.bf16 %v603, %v602
        %v614 = vpack.c.bf16 %v605, %v604
        %v615 = vpack.c.bf16 %v607, %v606
        %v616 = vld [vmem:[%s3] sm:$0xf]
        %v618 = vsel %vm318, %v616, 0
        %v621 = vsel %vm318, %v584, 0
        %v624 = vsel %vm318, %v585, 0
        %v627 = vsel %vm318, %v586, 0
        %v630 = vsel %vm318, %v587, 0
        %v633 = vsel %vm318, %v588, 0
        %v636 = vsel %vm318, %v589, 0
        %v639 = vsel %vm318, %v590, 0
        %v642 = vsel %vm318, %v591, 0
        %644 = vmatprep.subr.bf16.mxu0 0
        %645 = vmatpush1.bf16.xpose.msra.mxu0 %v642
        %646 = vmatprep.subr.bf16.mxu0 0
        %647 = vmatpush1.bf16.xpose.msra.mxu0 %v639
        %648 = vmatprep.subr.bf16.mxu0 0
        %649 = vmatpush1.bf16.xpose.msra.mxu0 %v636
        %650 = vmatprep.subr.bf16.mxu0 0
        %651 = vmatpush1.bf16.xpose.msra.mxu0 %v633
        %652 = vmatprep.subr.bf16.mxu0 0
        %653 = vmatpush1.bf16.xpose.msra.mxu0 %v630
        %654 = vmatprep.subr.bf16.mxu0 0
        %655 = vmatpush1.bf16.xpose.msra.mxu0 %v627
        %656 = vmatprep.subr.bf16.mxu0 0
        %657 = vmatpush1.bf16.xpose.msra.mxu0 %v624
        %658 = vmatprep.subr.bf16.mxu0 0
        %659 = vmatpush1.bf16.xpose.msra.mxu0 %v621
        %660 = vmatprep.subr.bf16.mxu0 0
        %661 = vmatpush2.bf16.xpose.msra.mxu0 0
        %662 = vmatprep.subr.bf16.mxu0 0
        %663 = vmatpush2.bf16.xpose.msra.mxu0 0
        %664 = vmatprep.subr.bf16.mxu0 0
        %665 = vmatpush2.bf16.xpose.msra.mxu0 0
        %666 = vmatprep.subr.bf16.mxu0 0
        %667 = vmatpush2.bf16.xpose.msra.mxu0 0
        %668 = vmatprep.subr.bf16.mxu0 0
        %669 = vmatpush2.bf16.xpose.msra.mxu0 0
        %670 = vmatprep.subr.bf16.mxu0 0
        %671 = vmatpush2.bf16.xpose.msra.mxu0 0
        %672 = vmatprep.subr.bf16.mxu0 0
        %673 = vmatpush2.bf16.xpose.msra.mxu0 0
        %674 = vmatprep.subr.bf16.mxu0 0
        %675 = vmatpush2.bf16.xpose.msra.mxu0 0
        %676 = vmatprep.mubr.bf16.mxu0 0
        %677 = vmatmul.mubr.bf16.gmra.mxu0 %v618
        %v678 = vpop.f32.mrf.mxu0
        %v679 = vadd.f32 0.0, %v678
        %v680 = vpop.f32.mrf.mxu0
        %v681 = vpop.f32.mrf.mxu0
        %v682 = vpop.f32.mrf.mxu0
        %683 = vdwg.mxu0
        %v685 = vsel %vm318, %v608, 0
        %v688 = vsel %vm318, %v609, 0
        %v691 = vsel %vm318, %v610, 0
        %v694 = vsel %vm318, %v611, 0
        %v697 = vsel %vm318, %v612, 0
        %v700 = vsel %vm318, %v613, 0
        %v703 = vsel %vm318, %v614, 0
        %v706 = vsel %vm318, %v615, 0
        %708 = vmatprep.subr.bf16.mxu0 0
        %709 = vmatpush1.bf16.xpose.msra.mxu0 %v706
        %710 = vmatprep.subr.bf16.mxu0 0
        %711 = vmatpush1.bf16.xpose.msra.mxu0 %v703
        %712 = vmatprep.subr.bf16.mxu0 0
        %713 = vmatpush1.bf16.xpose.msra.mxu0 %v700
        %714 = vmatprep.subr.bf16.mxu0 0
        %715 = vmatpush1.bf16.xpose.msra.mxu0 %v697
        %716 = vmatprep.subr.bf16.mxu0 0
        %717 = vmatpush1.bf16.xpose.msra.mxu0 %v694
        %718 = vmatprep.subr.bf16.mxu0 0
        %719 = vmatpush1.bf16.xpose.msra.mxu0 %v691
        %720 = vmatprep.subr.bf16.mxu0 0
        %721 = vmatpush1.bf16.xpose.msra.mxu0 %v688
        %722 = vmatprep.subr.bf16.mxu0 0
        %723 = vmatpush1.bf16.xpose.msra.mxu0 %v685
        %724 = vmatprep.subr.bf16.mxu0 0
        %725 = vmatpush2.bf16.xpose.msra.mxu0 0
        %726 = vmatprep.subr.bf16.mxu0 0
        %727 = vmatpush2.bf16.xpose.msra.mxu0 0
        %728 = vmatprep.subr.bf16.mxu0 0
        %729 = vmatpush2.bf16.xpose.msra.mxu0 0
        %730 = vmatprep.subr.bf16.mxu0 0
        %731 = vmatpush2.bf16.xpose.msra.mxu0 0
        %732 = vmatprep.subr.bf16.mxu0 0
        %733 = vmatpush2.bf16.xpose.msra.mxu0 0
        %734 = vmatprep.subr.bf16.mxu0 0
        %735 = vmatpush2.bf16.xpose.msra.mxu0 0
        %736 = vmatprep.subr.bf16.mxu0 0
        %737 = vmatpush2.bf16.xpose.msra.mxu0 0
        %738 = vmatprep.subr.bf16.mxu0 0
        %739 = vmatpush2.bf16.xpose.msra.mxu0 0
        %740 = vmatprep.mubr.bf16.mxu0 0
        %741 = vmatmul.mubr.bf16.gmra.mxu0 %v618
        %v742 = vpop.f32.mrf.mxu0
        %v743 = vadd.f32 0.0, %v742
        %v744 = vpop.f32.mrf.mxu0
        %v745 = vpop.f32.mrf.mxu0
        %v746 = vpop.f32.mrf.mxu0
        %747 = vdwg.mxu0
        %v748 = vmul.f32 %v679, %v679
        %v749 = vsub.f32 %v743, %v748
        %v750 = vmax.f32 %v749, 0.0
        %v751 = vadd.f32 %v750, 1e-05
        %v752 = vrsqrt.pop %v751
        %s753 = sld [smem:[#allocation2]]
        %s754 = sld [smem:[#allocation2 + $0x1]]
        %v755 = vstv %s753
        %v756 = vmul.f32 %v679, %v755
        %v758 = vrot.slane %v756, 1
        %v760 = vsub.f32 %v679, %v758
        %v762 = vrot.slane %v760, 7
        %v764 = vmul.f32 %v752, %v762
        %v765 = vstv %s754
        %v766 = vadd.f32 %v764, %v765
        %767 = vst [vmem:[%s231 - $0x1] sm:$0x2] %v766
        %s768 = sand.u32 %s138, 1
        %s769 = scalar_lea.sflag [#allocation3], %s768
        %s770 = sand.u32 %s138, 1
        %s771 = scalar_lea.vmem [#allocation5], %s770
        // Predicated region
        $region45: #{tpu_custom_call.1} parent=39 // pred_check
          %p772 = pneg %p148
        $region46: #{tpu_custom_call.1} parent=39 // pred_check_branch
          %774 = sbr.rel (%p772) target = $region48
        $region47: #{tpu_custom_call.1} parent=39 // pred_region
          %s776 = ssub.s32 16, 16
          %777 = vsyncadd %s769, %s776
          %s778 = smul.addr %s20, 16
          %s779 = scalar_lea.hbm %s5, %s778
          %s781 = sshll.u32 %s771, 4
          %s782 = int_to_ptr.vmem [resolvable:$true] %s781
          %784 = dma.vmem_to_hbm [thread:$0]  %s782, 16, %s779, %s769
        $region48: #{tpu_custom_call.1} parent=39 // pred_fallthru
          _
      $region40: #{tpu_custom_call.1} parent=5 // pred_fallthru
        _
      %p785 = scmp.le.s32.totalorder 2, %s15
      // Predicated region
      $region49: #{tpu_custom_call.1} parent=5 // pred_check
        %p786 = pneg %p785
      $region50: #{tpu_custom_call.1} parent=5 // pred_check_branch
        %788 = sbr.rel (%p786) target = $region52
      $region51: #{tpu_custom_call.1} parent=5 // pred_region
        %s789 = ssub.s32 %s15, 2
        // Predicated region
        $region53: #{tpu_custom_call.1} parent=51 // pred_check
          %p790 = pneg %p154
        $region54: #{tpu_custom_call.1} parent=51 // pred_check_branch
          %792 = sbr.rel (%p790) target = $region56
        $region55: #{tpu_custom_call.1} parent=51 // pred_region
          %s793 = sand.u32 %s139, 1
          %s794 = scalar_lea.sflag [#allocation3], %s793
          %s795 = sand.u32 %s139, 1
          %s796 = scalar_lea.vmem [#allocation5], %s795
          %797 = dma.done %s794, 16
        $region56: #{tpu_custom_call.1} parent=51 // pred_fallthru
          _
      $region52: #{tpu_custom_call.1} parent=5 // pred_fallthru
        _
    $region6: #{tpu_custom_call.1} parent=1 // loop_footer
      %s19 = sadd.s32 1, %s15
    $region7: #{tpu_custom_call.1} parent=1 // loop_footer_branch
      %14 = sbr.rel target = $region3
    $region8: #{tpu_custom_call.1} parent=1 // loop_exit
      _
    %798 = vsyncpa [#allocation3], 1
    %s799 = scalar_lea.sflag [#allocation3], 1
    %800 = vsyncpa %s799, 1
    %801 = vsyncpa [#allocation4], 1
    %s802 = scalar_lea.sflag [#allocation4], 1
    %803 = vsyncpa %s802, 1

</llo_original>
